<compile_context>
chip_gen: v5e
topology: v5e:2x2
jax: 0.10.0
libtpu: 0.0.40
codegen_flags: <defaults>
</compile_context>

<pallas_src>
import functools

import jax
import jax.numpy as jnp
from jax.experimental import pallas as pl
from jax.experimental.pallas import tpu as pltpu


def _round_up(x, m):
    return ((x + m - 1) // m) * m


def _vmem_capacity_bytes():
    try:
        return int(pltpu.get_tpu_info().vmem_capacity_bytes)
    except Exception:
        return 64 * 1024 * 1024  # conservative fallback (v7x per-core VMEM)


def _vmem_usage_bytes(t_tile, C, K, padding, itemsize):
    """Rough per-step VMEM estimate (double-buffered streams + weights + f32 temps)."""
    t_win = t_tile + padding
    act_io = 4 * 2 * C * t_tile * itemsize                       # 2 in + 2 out, double-buffered
    weights = 2 * ((K + 1) * 2 * C * C * itemsize + 2 * (2 * C) * 4)
    scratch = C * max(padding, 1) * itemsize
    interm = C * t_win * itemsize + K * C * t_tile * itemsize + 10 * C * t_tile * 4
    return act_io + weights + scratch + interm


def _pick_time_tile(T, C, K, padding, itemsize, max_tile=2048):
    """Largest 128-multiple tile that fits the (generation-aware) VMEM budget."""
    vmem_limit = min(int(_vmem_capacity_bytes() * 3 // 4), 100 * 1024 * 1024)
    budget = int(0.8 * vmem_limit)
    cap = min(max_tile, _round_up(T, 128))
    for cand in range(cap, 127, -128):
        if _vmem_usage_bytes(cand, C, K, padding, itemsize) <= budget:
            return cand
    return 128


def wavenet_cell_kernel(x_ref, skip_ref, wfg_ref, bfg_ref, whs_ref, bhs_ref,
                        hout_ref, skipout_ref, hist_ref,
                        *, dilation, padding, k_taps, c, t_tile, gate_dtype):
    """One (batch, time-tile) block per grid step; causal history carried in VMEM scratch."""
    t = pl.program_id(1)
    x = x_ref[...]                                               # (C, Tt) activation dtype

    if padding > 0:
        @pl.when(t == 0)
        def _():
            hist_ref[...] = jnp.zeros_like(hist_ref)             # causal left-pad
        window = jnp.concatenate([hist_ref[...], x], axis=-1)    # (C, Tt + padding)
    else:
        window = x

    # Dilated conv for stacked [f; g]: K accumulated MXU matmuls, f32 accumulation.
    acc = jnp.dot(wfg_ref[0], window[:, 0:t_tile],
                  preferred_element_type=jnp.float32)
    for k in range(1, k_taps):
        acc += jnp.dot(wfg_ref[k],
                       window[:, k * dilation:k * dilation + t_tile],
                       preferred_element_type=jnp.float32)
    y = acc + bfg_ref[...]                                       # (2C, Tt) f32

    # Gated activation (bf16 on bf16 activations -> bf16 EUP on v6e/v7x, else f32).
    f = y[:c].astype(gate_dtype)
    g = y[c:].astype(gate_dtype)
    gated = (jnp.tanh(f) * jax.nn.sigmoid(g)).astype(whs_ref.dtype)   # (C, Tt)

    # 1x1 conv for stacked [h_next; skip_next]: one (2C, C) @ (C, Tt) matmul.
    z = jnp.dot(whs_ref[...], gated, preferred_element_type=jnp.float32) + bhs_ref[...]

    hout_ref[...] = (x.astype(jnp.float32) + z[:c]).astype(hout_ref.dtype)
    skipout_ref[...] = (skip_ref[...].astype(jnp.float32) + z[c:]).astype(skipout_ref.dtype)

    if padding > 0:
        # Carry the last `padding` columns of the window as history for the next time tile.
        hist_ref[...] = window[:, t_tile:t_tile + padding]


def wavenet_cell_forward(h_prev, skip_prev, w_dil, b_dil, w_sr, b_sr,
                         *, padding, dilation, time_tile=None, donate_inputs=False):
    B, C, T = h_prev.shape
    K = w_dil.shape[2]
    assert w_dil.shape[0] == 2 * C and w_sr.shape[0] == 2 * C
    assert padding == dilation * (K - 1), \
        "residual add requires causal padding == dilation * (kernel_size - 1)"

    dtype = h_prev.dtype
    itemsize = jnp.dtype(dtype).itemsize

    if time_tile is None:
        t_tile = _pick_time_tile(T, C, K, padding, itemsize)
    else:
        t_tile = int(time_tile)
        assert t_tile % 128 == 0 or t_tile >= T, "time_tile must be a 128 multiple (or >= T)"

    T_pad = _round_up(T, t_tile)
    nt = T_pad // t_tile

    if T_pad != T:
        tail = ((0, 0), (0, 0), (0, T_pad - T))
        h_in = jnp.pad(h_prev, tail)
        skip_in = jnp.pad(skip_prev, tail)
    else:
        h_in, skip_in = h_prev, skip_prev

    # Weight staging (glue, tiny): (K, 2C, C) tap stack for the dilated conv, (2C, C) for the
    # 1x1 conv, biases as (2C, 1) f32 columns.
    w_fg = jnp.transpose(w_dil, (2, 0, 1)).astype(dtype)          # (K, 2C, C)
    b_fg = b_dil.reshape(2 * C, 1).astype(jnp.float32)
    w_hs = w_sr[:, :, 0].astype(dtype)                            # (2C, C)
    b_hs = b_sr.reshape(2 * C, 1).astype(jnp.float32)

    gate_dtype = jnp.bfloat16 if dtype == jnp.bfloat16 else jnp.float32

    kernel = functools.partial(
        wavenet_cell_kernel, dilation=dilation, padding=padding,
        k_taps=K, c=C, t_tile=t_tile, gate_dtype=gate_dtype)

    act_spec = pl.BlockSpec((None, C, t_tile), lambda b, t: (b, 0, t))
    wfg_spec = pl.BlockSpec((K, 2 * C, C), lambda b, t: (0, 0, 0))
    whs_spec = pl.BlockSpec((2 * C, C), lambda b, t: (0, 0))
    bias_spec = pl.BlockSpec((2 * C, 1), lambda b, t: (0, 0))

    vmem_limit = min(int(_vmem_capacity_bytes() * 3 // 4), 100 * 1024 * 1024)

    flops = 2 * B * T_pad * (2 * C) * C * (K + 1)
    transcendentals = 3 * B * C * T_pad
    bytes_accessed = (itemsize * 4 * B * C * T_pad
                      + itemsize * ((K + 1) * 2 * C * C) + 4 * 4 * C)

    io_alias = {0: 0, 1: 1} if (donate_inputs and T_pad == T) else {}

    h_out, skip_out = pl.pallas_call(
        kernel,
        out_shape=(jax.ShapeDtypeStruct((B, C, T_pad), h_prev.dtype),
                   jax.ShapeDtypeStruct((B, C, T_pad), skip_prev.dtype)),
        grid_spec=pltpu.PrefetchScalarGridSpec(
            num_scalar_prefetch=0,
            grid=(B, nt),
            in_specs=[act_spec, act_spec, wfg_spec, bias_spec, whs_spec, bias_spec],
            out_specs=[act_spec, act_spec],
            scratch_shapes=[pltpu.VMEM((C, max(padding, 1)), dtype)]),
        compiler_params=pltpu.CompilerParams(
            dimension_semantics=("parallel", "arbitrary"),
            vmem_limit_bytes=vmem_limit),
        cost_estimate=pl.CostEstimate(flops=int(flops),
                                      transcendentals=int(transcendentals),
                                      bytes_accessed=int(bytes_accessed)),
        input_output_aliases=io_alias,
    )(h_in, skip_in, w_fg, b_fg, w_hs, b_hs)

    if T_pad != T:
        h_out = h_out[:, :, :T]
        skip_out = skip_out[:, :, :T]
    return h_out, skip_out


def init_params(key, in_channels, out_channels, kernel_size):
    """Deterministic synthetic params matching the PyTorch __init__ shapes/init ranges."""
    k_dil = (1.0 / (in_channels * kernel_size)) ** 0.5
    k_sr = (1.0 / (out_channels * 1)) ** 0.5
    k1, k2, k3, k4 = jax.random.split(key, 4)
    w_dil = jax.random.uniform(k1, (2 * out_channels, in_channels, kernel_size),
                               jnp.float32, -k_dil, k_dil)
    b_dil = jax.random.uniform(k2, (2 * out_channels,), jnp.float32, -k_dil, k_dil)
    w_sr = jax.random.uniform(k3, (2 * out_channels, out_channels, 1),
                              jnp.float32, -k_sr, k_sr)
    b_sr = jax.random.uniform(k4, (2 * out_channels,), jnp.float32, -k_sr, k_sr)
    return w_dil, b_dil, w_sr, b_sr


def reference_forward(h_prev, skip_prev, w_dil, b_dil, w_sr, b_sr, *, padding, dilation):
    """Pure-JAX reference (lax.conv) for correctness check."""
    C = h_prev.shape[1]
    xp = jnp.pad(h_prev, ((0, 0), (0, 0), (padding, 0)))
    y = jax.lax.conv_general_dilated(
        xp, w_dil, window_strides=(1,), padding='VALID', rhs_dilation=(dilation,),
        dimension_numbers=('NCH', 'OIH', 'NCH')) + b_dil[None, :, None]
    f, g = y[:, :C], y[:, C:]
    gated = jnp.tanh(f) * jax.nn.sigmoid(g)
    z = jax.lax.conv_general_dilated(
        gated, w_sr, window_strides=(1,), padding='VALID',
        dimension_numbers=('NCH', 'OIH', 'NCH')) + b_sr[None, :, None]
    return h_prev + z[:, :C], skip_prev + z[:, C:]


if __name__ == "__main__":
    key = jax.random.PRNGKey(0)
    k1, k2, k3, k4, k5, k6 = jax.random.split(key, 6)

    # --- Test 1: multi-tile time grid (history carried across tiles), K=2, dilation=2. ---
    B, C, T = 2, 8, 256
    kernel_size, dilation = 2, 2
    padding = dilation * (kernel_size - 1)
    h_prev = jax.random.normal(k1, (B, C, T), jnp.float32)
    skip_prev = jax.random.normal(k2, (B, C, T), jnp.float32)
    w_dil, b_dil, w_sr, b_sr = init_params(k3, C, C, kernel_size)

    h_out, skip_out = wavenet_cell_forward(
        h_prev, skip_prev, w_dil, b_dil, w_sr, b_sr,
        padding=padding, dilation=dilation, time_tile=128)   # 2 time tiles -> exercises carry
    jax.block_until_ready((h_out, skip_out))

    h_ref, skip_ref = reference_forward(
        h_prev, skip_prev, w_dil, b_dil, w_sr, b_sr, padding=padding, dilation=dilation)
    assert jnp.allclose(h_out, h_ref, atol=1e-3, rtol=1e-3)
    assert jnp.allclose(skip_out, skip_ref, atol=1e-3, rtol=1e-3)

    # --- Test 2: T not a multiple of 128, K=3, dilation=4 (tail padding + wider history). ---
    B2, C2, T2 = 1, 16, 200
    kernel_size2, dilation2 = 3, 4
    padding2 = dilation2 * (kernel_size2 - 1)
    h_prev2 = jax.random.normal(k4, (B2, C2, T2), jnp.float32)
    skip_prev2 = jax.random.normal(k5, (B2, C2, T2), jnp.float32)
    w_dil2, b_dil2, w_sr2, b_sr2 = init_params(k6, C2, C2, kernel_size2)

    h_ref2, skip_ref2 = reference_forward(
        h_prev2, skip_prev2, w_dil2, b_dil2, w_sr2, b_sr2,
        padding=padding2, dilation=dilation2)

    # Explicit 128 tile (forces 2 tiles + a 56-column tail), then auto tile selection.
    for tt in (128, None):
        h_out2, skip_out2 = wavenet_cell_forward(
            h_prev2, skip_prev2, w_dil2, b_dil2, w_sr2, b_sr2,
            padding=padding2, dilation=dilation2, time_tile=tt)
        jax.block_until_ready((h_out2, skip_out2))
        assert jnp.allclose(h_out2, h_ref2, atol=1e-3, rtol=1e-3)
        assert jnp.allclose(skip_out2, skip_ref2, atol=1e-3, rtol=1e-3)

    print("KERNEL_OK")
</pallas_src>

<mosaic_0001>
module attributes {stable_mosaic.version = 11 : i64} {
  func.func @wavenet_cell_kernel(%arg0: i32, %arg1: i32, %arg2: memref<1x8x128xf32, #tpu.memory_space<vmem>>, %arg3: memref<1x8x128xf32, #tpu.memory_space<vmem>>, %arg4: memref<2x16x8xf32, #tpu.memory_space<vmem>>, %arg5: memref<16x1xf32, #tpu.memory_space<vmem>>, %arg6: memref<16x8xf32, #tpu.memory_space<vmem>>, %arg7: memref<16x1xf32, #tpu.memory_space<vmem>>, %arg8: memref<1x8x128xf32, #tpu.memory_space<vmem>>, %arg9: memref<1x8x128xf32, #tpu.memory_space<vmem>>, %arg10: memref<8x2xf32, #tpu.memory_space<vmem>>) attributes {dimension_semantics = [#tpu.dimension_semantics<parallel>, #tpu.dimension_semantics<arbitrary>], iteration_bounds = array<i64: 2, 2>, scalar_prefetch = 0 : i64, scratch_operands = 1 : i64, tpu.core_type = #tpu.core_type<tc>, window_params = [{transform_indices = @transform_0, window_bounds = array<i64: 1, 8, 128>}, {transform_indices = @transform_1, window_bounds = array<i64: 1, 8, 128>}, {pipeline_mode = #tpu.pipeline_mode<synchronous>, transform_indices = @transform_2, window_bounds = array<i64: 2, 16, 8>}, {pipeline_mode = #tpu.pipeline_mode<synchronous>, transform_indices = @transform_3, window_bounds = array<i64: 16, 1>}, {pipeline_mode = #tpu.pipeline_mode<synchronous>, transform_indices = @transform_4, window_bounds = array<i64: 16, 8>}, {pipeline_mode = #tpu.pipeline_mode<synchronous>, transform_indices = @transform_5, window_bounds = array<i64: 16, 1>}, {transform_indices = @transform_6, window_bounds = array<i64: 1, 8, 128>}, {transform_indices = @transform_7, window_bounds = array<i64: 1, 8, 128>}]} {
    %c0 = arith.constant 0 : index
    %c0_0 = arith.constant 0 : index
    %c0_1 = arith.constant 0 : index
    %0 = vector.load %arg2[%c0, %c0_0, %c0_1] : memref<1x8x128xf32, #tpu.memory_space<vmem>>, vector<1x8x128xf32>
    %1 = vector.shape_cast %0 : vector<1x8x128xf32> to vector<8x128xf32>
    %c0_i32 = arith.constant 0 : i32
    %2 = arith.cmpi eq, %arg1, %c0_i32 : i32
    %3 = arith.extui %2 : i1 to i32
    %c0_i32_2 = arith.constant 0 : i32
    %4 = arith.cmpi ne, %3, %c0_i32_2 : i32
    scf.if %4 {
      %cst_30 = arith.constant 0.000000e+00 : f32
      %47 = vector.broadcast %cst_30 : f32 to vector<8x2xf32>
      %c0_31 = arith.constant 0 : index
      %c0_32 = arith.constant 0 : index
      %48 = vector.load %arg10[%c0_31, %c0_32] : memref<8x2xf32, #tpu.memory_space<vmem>>, vector<8x2xf32>
      tpu.vector_store %arg10[%c0_31, %c0_32], %47 {strides = array<i32>} : memref<8x2xf32, #tpu.memory_space<vmem>>, vector<8x2xf32>,
    } else {
    }
    %c0_3 = arith.constant 0 : index
    %c0_4 = arith.constant 0 : index
    %5 = vector.load %arg10[%c0_3, %c0_4] : memref<8x2xf32, #tpu.memory_space<vmem>>, vector<8x2xf32>
    %6 = tpu.concatenate %5, %1 in 1 : vector<8x2xf32>, vector<8x128xf32> -> vector<8x130xf32>
    %c0_5 = arith.constant 0 : index
    %c0_6 = arith.constant 0 : index
    %c0_7 = arith.constant 0 : index
    %7 = vector.load %arg4[%c0_5, %c0_6, %c0_7] : memref<2x16x8xf32, #tpu.memory_space<vmem>>, vector<1x16x8xf32>
    %8 = vector.shape_cast %7 : vector<1x16x8xf32> to vector<16x8xf32>
    %9 = vector.extract_strided_slice %6 {offsets = [0, 0], sizes = [8, 128], strides = [1, 1]} : vector<8x130xf32> to vector<8x128xf32>
    %cst = arith.constant dense<0.000000e+00> : vector<16x128xf32>
    %10 = tpu.matmul %8, %9, %cst {dimension_numbers = #tpu.dot_dimension_numbers<[1], [0], [0], [1], [0, 0, 1, 1], [], []>} : vector<16x8xf32>, vector<8x128xf32>, vector<16x128xf32> -> vector<16x128xf32>
    %c1 = arith.constant 1 : index
    %c0_8 = arith.constant 0 : index
    %c0_9 = arith.constant 0 : index
    %11 = vector.load %arg4[%c1, %c0_8, %c0_9] : memref<2x16x8xf32, #tpu.memory_space<vmem>>, vector<1x16x8xf32>
    %12 = vector.shape_cast %11 : vector<1x16x8xf32> to vector<16x8xf32>
    %13 = vector.extract_strided_slice %6 {offsets = [0, 2], sizes = [8, 128], strides = [1, 1]} : vector<8x130xf32> to vector<8x128xf32>
    %cst_10 = arith.constant dense<0.000000e+00> : vector<16x128xf32>
    %14 = tpu.matmul %12, %13, %cst_10 {dimension_numbers = #tpu.dot_dimension_numbers<[1], [0], [0], [1], [0, 0, 1, 1], [], []>} : vector<16x8xf32>, vector<8x128xf32>, vector<16x128xf32> -> vector<16x128xf32>
    %15 = arith.addf %10, %14 : vector<16x128xf32>
    %c0_11 = arith.constant 0 : index
    %c0_12 = arith.constant 0 : index
    %16 = vector.load %arg5[%c0_11, %c0_12] : memref<16x1xf32, #tpu.memory_space<vmem>>, vector<16x1xf32>
    %17 = vector.broadcast %16 : vector<16x1xf32> to vector<16x128xf32>
    %18 = arith.addf %15, %17 : vector<16x128xf32>
    %19 = vector.extract_strided_slice %18 {offsets = [0, 0], sizes = [8, 128], strides = [1, 1]} : vector<16x128xf32> to vector<8x128xf32>
    %20 = vector.extract_strided_slice %18 {offsets = [8, 0], sizes = [8, 128], strides = [1, 1]} : vector<16x128xf32> to vector<8x128xf32>
    %21 = math.tanh %19 : vector<8x128xf32>
    %22 = arith.negf %20 : vector<8x128xf32>
    %23 = math.exp %22 : vector<8x128xf32>
    %cst_13 = arith.constant 1.000000e+00 : f32
    %24 = vector.broadcast %cst_13 : f32 to vector<8x128xf32>
    %25 = arith.addf %24, %23 : vector<8x128xf32>
    %26 = arith.divf %24, %25 : vector<8x128xf32>
    %27 = arith.mulf %21, %26 : vector<8x128xf32>
    %c0_14 = arith.constant 0 : index
    %c0_15 = arith.constant 0 : index
    %28 = vector.load %arg6[%c0_14, %c0_15] : memref<16x8xf32, #tpu.memory_space<vmem>>, vector<16x8xf32>
    %cst_16 = arith.constant dense<0.000000e+00> : vector<16x128xf32>
    %29 = tpu.matmul %28, %27, %cst_16 {dimension_numbers = #tpu.dot_dimension_numbers<[1], [0], [0], [1], [0, 0, 1, 1], [], []>} : vector<16x8xf32>, vector<8x128xf32>, vector<16x128xf32> -> vector<16x128xf32>
    %c0_17 = arith.constant 0 : index
    %c0_18 = arith.constant 0 : index
    %30 = vector.load %arg7[%c0_17, %c0_18] : memref<16x1xf32, #tpu.memory_space<vmem>>, vector<16x1xf32>
    %31 = vector.broadcast %30 : vector<16x1xf32> to vector<16x128xf32>
    %32 = arith.addf %29, %31 : vector<16x128xf32>
    %33 = vector.extract_strided_slice %32 {offsets = [0, 0], sizes = [8, 128], strides = [1, 1]} : vector<16x128xf32> to vector<8x128xf32>
    %34 = arith.addf %1, %33 : vector<8x128xf32>
    %c0_19 = arith.constant 0 : index
    %c0_20 = arith.constant 0 : index
    %c0_21 = arith.constant 0 : index
    %35 = vector.load %arg8[%c0_19, %c0_20, %c0_21] : memref<1x8x128xf32, #tpu.memory_space<vmem>>, vector<1x8x128xf32>
    %36 = vector.shape_cast %35 : vector<1x8x128xf32> to vector<8x128xf32>
    %37 = vector.shape_cast %34 : vector<8x128xf32> to vector<1x8x128xf32>
    tpu.vector_store %arg8[%c0_19, %c0_20, %c0_21], %37 {strides = array<i32>} : memref<1x8x128xf32, #tpu.memory_space<vmem>>, vector<1x8x128xf32>,
    %c0_22 = arith.constant 0 : index
    %c0_23 = arith.constant 0 : index
    %c0_24 = arith.constant 0 : index
    %38 = vector.load %arg3[%c0_22, %c0_23, %c0_24] : memref<1x8x128xf32, #tpu.memory_space<vmem>>, vector<1x8x128xf32>
    %39 = vector.shape_cast %38 : vector<1x8x128xf32> to vector<8x128xf32>
    %40 = vector.extract_strided_slice %32 {offsets = [8, 0], sizes = [8, 128], strides = [1, 1]} : vector<16x128xf32> to vector<8x128xf32>
    %41 = arith.addf %39, %40 : vector<8x128xf32>
    %c0_25 = arith.constant 0 : index
    %c0_26 = arith.constant 0 : index
    %c0_27 = arith.constant 0 : index
    %42 = vector.load %arg9[%c0_25, %c0_26, %c0_27] : memref<1x8x128xf32, #tpu.memory_space<vmem>>, vector<1x8x128xf32>
    %43 = vector.shape_cast %42 : vector<1x8x128xf32> to vector<8x128xf32>
    %44 = vector.shape_cast %41 : vector<8x128xf32> to vector<1x8x128xf32>
    tpu.vector_store %arg9[%c0_25, %c0_26, %c0_27], %44 {strides = array<i32>} : memref<1x8x128xf32, #tpu.memory_space<vmem>>, vector<1x8x128xf32>,
    %45 = vector.extract_strided_slice %6 {offsets = [0, 128], sizes = [8, 2], strides = [1, 1]} : vector<8x130xf32> to vector<8x2xf32>
    %c0_28 = arith.constant 0 : index
    %c0_29 = arith.constant 0 : index
    %46 = vector.load %arg10[%c0_28, %c0_29] : memref<8x2xf32, #tpu.memory_space<vmem>>, vector<8x2xf32>
    tpu.vector_store %arg10[%c0_28, %c0_29], %45 {strides = array<i32>} : memref<8x2xf32, #tpu.memory_space<vmem>>, vector<8x2xf32>,
    return
  }
  func.func @transform_0(%arg0: i32, %arg1: i32) -> (i32, i32, i32) {
    %c0_i32 = arith.constant 0 : i32
    %c0_i32_0 = arith.constant 0 : i32
    return %arg0, %c0_i32, %arg1 : i32, i32, i32
  }
  func.func @transform_1(%arg0: i32, %arg1: i32) -> (i32, i32, i32) {
    %c0_i32 = arith.constant 0 : i32
    %c0_i32_0 = arith.constant 0 : i32
    return %arg0, %c0_i32, %arg1 : i32, i32, i32
  }
  func.func @transform_2(%arg0: i32, %arg1: i32) -> (i32, i32, i32) {
    %c0_i32 = arith.constant 0 : i32
    %c0_i32_0 = arith.constant 0 : i32
    %c0_i32_1 = arith.constant 0 : i32
    %c0_i32_2 = arith.constant 0 : i32
    return %c0_i32, %c0_i32_0, %c0_i32_1 : i32, i32, i32
  }
  func.func @transform_3(%arg0: i32, %arg1: i32) -> (i32, i32) {
    %c0_i32 = arith.constant 0 : i32
    %c0_i32_0 = arith.constant 0 : i32
    %c0_i32_1 = arith.constant 0 : i32
    return %c0_i32, %c0_i32_0 : i32, i32
  }
  func.func @transform_4(%arg0: i32, %arg1: i32) -> (i32, i32) {
    %c0_i32 = arith.constant 0 : i32
    %c0_i32_0 = arith.constant 0 : i32
    %c0_i32_1 = arith.constant 0 : i32
    return %c0_i32, %c0_i32_0 : i32, i32
  }
  func.func @transform_5(%arg0: i32, %arg1: i32) -> (i32, i32) {
    %c0_i32 = arith.constant 0 : i32
    %c0_i32_0 = arith.constant 0 : i32
    %c0_i32_1 = arith.constant 0 : i32
    return %c0_i32, %c0_i32_0 : i32, i32
  }
  func.func @transform_6(%arg0: i32, %arg1: i32) -> (i32, i32, i32) {
    %c0_i32 = arith.constant 0 : i32
    %c0_i32_0 = arith.constant 0 : i32
    return %arg0, %c0_i32, %arg1 : i32, i32, i32
  }
  func.func @transform_7(%arg0: i32, %arg1: i32) -> (i32, i32, i32) {
    %c0_i32 = arith.constant 0 : i32
    %c0_i32_0 = arith.constant 0 : i32
    return %arg0, %c0_i32, %arg1 : i32, i32, i32
  }
}

</mosaic_0001>

<llo_original>
// kernel: tpu_custom_call.1
$region0: #{tpu_custom_call.1}
  #allocation0 [shape = 'u32[]', space=smem, size = 0x4, offset = 0x4, fixed_abs, tag = 'smem constant byte address 0x4 - core index']
  #allocation1 [shape = 'u32[72,128]{1,0:T(1,128)}', space=vmem, size = 0x9000, scoped, tag = 'internal scratch']
  #allocation2 [shape = 'f32[8,2]{1,0:T(8,128)}', space=vmem, size = 0x1000, scoped, tag = 'scratch operand']
  %s0 = inlined_call_operand.vmem [shape: f32[2,8,256], index: 0, kind: input, shape index: {}]
  %s1 = inlined_call_operand.vmem [shape: f32[2,8,256], index: 1, kind: input, shape index: {}]
  %s2 = inlined_call_operand.vmem [shape: f32[2,16,8], index: 2, kind: input, shape index: {}]
  %s3 = inlined_call_operand.vmem [shape: f32[16,1], index: 3, kind: input, shape index: {}]
  %s4 = inlined_call_operand.vmem [shape: f32[16,8], index: 4, kind: input, shape index: {}]
  %s5 = inlined_call_operand.vmem [shape: f32[16,1], index: 5, kind: input, shape index: {}]
  %s6 = inlined_call_operand.hbm [shape: f32[2,8,256], index: 6, kind: output, shape index: {0}]
  %s7 = inlined_call_operand.hbm [shape: f32[2,8,256], index: 7, kind: output, shape index: {1}]
  %8 = xla_tuple %s6, %s7
  %s9 = sld [smem:[#allocation0]]
  $region69: #{tpu_custom_call.1} parent=0
    _
  %s11 = ssub.s32 1, %s9
  %s12 = scalar_select 0, %s11, %s9
  $region1: #{tpu_custom_call.1} parent=0
    #allocation3 [shape = 'u8[8192]{0}', space=vmem, size = 0x2000, scoped, tag = 'output window, operand 0']
    #allocation4 [shape = 's32[2]{0}', space=sflag, size = 0x8, scoped, tag = 'scoped memory for tpu_custom_call.1']
    #allocation5 [shape = 'u8[8192]{0}', space=vmem, size = 0x2000, scoped, tag = 'output window, operand 1']
    #allocation6 [shape = 's32[2]{0}', space=sflag, size = 0x8, scoped, tag = 'scoped memory for tpu_custom_call.1']
    %13 = vsyncpa [#allocation4], 0
    %s14 = scalar_lea.sflag [#allocation4], 1
    %15 = vsyncpa %s14, 0
    %16 = vsyncpa [#allocation6], 0
    %s17 = scalar_lea.sflag [#allocation6], 1
    %18 = vsyncpa %s17, 0
    loop: start=0, step=1, limit=6
    $region2: #{tpu_custom_call.1} parent=1 // loop_pre_header
      _
    $region3: #{tpu_custom_call.1} parent=1 // loop_header
      %s20 = sphi 0, %s24
      %p21 = scmp.ge.s32.totalorder %s20, 6
      %s27 = sphi 0, %s39
      %s28 = sphi 0, %s35
      %s29 = sphi 0, %s27
      %s30 = sphi 0, %s28
      %s31 = sphi 0, %s29
      %s32 = sphi 0, %s30
      %s44 = sphi 0, %s46
      %s47 = sphi 0, %s44
      %s48 = sphi 0, %s47
      %s64 = sphi 0, %s48
      %s72 = sphi 0, %s74
      %s75 = sphi 0, %s72
      %s76 = sphi 0, %s75
      %s92 = sphi 0, %s76
      %s96 = sphi 0, %s96
      %s98 = sphi 0, %s96
      %s99 = sphi 0, %s98
      %s113 = sphi 0, %s99
      %s117 = sphi 0, %s117
      %s119 = sphi 0, %s117
      %s120 = sphi 0, %s119
      %s134 = sphi 0, %s120
      %s138 = sphi 0, %s138
      %s140 = sphi 0, %s138
      %s141 = sphi 0, %s140
      %s155 = sphi 0, %s141
      %s159 = sphi 0, %s159
      %s161 = sphi 0, %s159
      %s162 = sphi 0, %s161
      %s176 = sphi 0, %s162
      %s184 = sphi 0, %s186
      %s187 = sphi 0, %s184
      %s188 = sphi 0, %s187
      %s204 = sphi 0, %s188
      %s212 = sphi 0, %s214
      %s215 = sphi 0, %s212
      %s216 = sphi 0, %s215
      %s232 = sphi 0, %s216
    $region4: #{tpu_custom_call.1} parent=1 // loop_header_branch
      %23 = sbr.rel (%p21) target = $region8
    $region5: #{tpu_custom_call.1} parent=1 // loop_body
      %s25 = ssub.s32 %s20, 1
      %s26 = ssub.s32 %s20, 2
      %s33 = sadd.s32 1, %s28
      %p34 = scmp.ge.s32.totalorder %s33, 2
      %s35 = scalar_select %p34, 0, %s33
      %s36 = sadd.s32 1, %s27
      %s37 = scalar_select %p34, %s36, %s27
      %p38 = scmp.ge.s32.totalorder %s37, 2
      %s39 = scalar_select %p38, 0, %s37
      %s40 = ssub.s32 %s27, %s39
      %s41 = ssub.s32 %s28, %s35
      %s42 = sor.u32 %s40, %s41
      %p43 = scmp.eq.s32.totalorder %s42, 0
      %s45 = sadd.s32 %s44, 1
      %s46 = scalar_select %p43, %s44, %s45
      %p49 = pneg %p43
      %p50 = scmp.eq.s32.totalorder %s20, 3
      %p51 = por %p49, %p50
      %p52 = scmp.ne.s32.totalorder %s44, %s47
      %p53 = scmp.eq.s32.totalorder %s20, 0
      %p54 = por %p52, %p53
      %p55 = scmp.ne.s32.totalorder %s44, %s47
      %p56 = scmp.eq.s32.totalorder %s25, 3
      %p57 = por %p55, %p56
      %p58 = scmp.ne.s32.totalorder %s47, %s48
      %p59 = scmp.eq.s32.totalorder %s25, 0
      %p60 = por %p58, %p59
      %p61 = scmp.ne.s32.totalorder %s47, %s48
      %p62 = scmp.eq.s32.totalorder %s26, 3
      %p63 = por %p61, %p62
      %p65 = scmp.ne.s32.totalorder %s48, %s64
      %p66 = scmp.eq.s32.totalorder %s26, 0
      %p67 = por %p65, %p66
      %s68 = ssub.s32 %s27, %s39
      %s69 = ssub.s32 %s28, %s35
      %s70 = sor.u32 %s68, %s69
      %p71 = scmp.eq.s32.totalorder %s70, 0
      %s73 = sadd.s32 %s72, 1
      %s74 = scalar_select %p71, %s72, %s73
      %p77 = pneg %p71
      %p78 = scmp.eq.s32.totalorder %s20, 3
      %p79 = por %p77, %p78
      %p80 = scmp.ne.s32.totalorder %s72, %s75
      %p81 = scmp.eq.s32.totalorder %s20, 0
      %p82 = por %p80, %p81
      %p83 = scmp.ne.s32.totalorder %s72, %s75
      %p84 = scmp.eq.s32.totalorder %s25, 3
      %p85 = por %p83, %p84
      %p86 = scmp.ne.s32.totalorder %s75, %s76
      %p87 = scmp.eq.s32.totalorder %s25, 0
      %p88 = por %p86, %p87
      %p89 = scmp.ne.s32.totalorder %s75, %s76
      %p90 = scmp.eq.s32.totalorder %s26, 3
      %p91 = por %p89, %p90
      %p93 = scmp.ne.s32.totalorder %s76, %s92
      %p94 = scmp.eq.s32.totalorder %s26, 0
      %p95 = por %p93, %p94
      %s97 = sadd.s32 %s96, 1
      %p100 = scmp.eq.s32.totalorder %s20, 3
      %p101 = scmp.ne.s32.totalorder %s96, %s98
      %p102 = scmp.eq.s32.totalorder %s20, 0
      %p103 = por %p101, %p102
      %p104 = scmp.ne.s32.totalorder %s96, %s98
      %p105 = scmp.eq.s32.totalorder %s25, 3
      %p106 = por %p104, %p105
      %p107 = scmp.ne.s32.totalorder %s98, %s99
      %p108 = scmp.eq.s32.totalorder %s25, 0
      %p109 = por %p107, %p108
      %p110 = scmp.ne.s32.totalorder %s98, %s99
      %p111 = scmp.eq.s32.totalorder %s26, 3
      %p112 = por %p110, %p111
      %p114 = scmp.ne.s32.totalorder %s99, %s113
      %p115 = scmp.eq.s32.totalorder %s26, 0
      %p116 = por %p114, %p115
      %s118 = sadd.s32 %s117, 1
      %p121 = scmp.eq.s32.totalorder %s20, 3
      %p122 = scmp.ne.s32.totalorder %s117, %s119
      %p123 = scmp.eq.s32.totalorder %s20, 0
      %p124 = por %p122, %p123
      %p125 = scmp.ne.s32.totalorder %s117, %s119
      %p126 = scmp.eq.s32.totalorder %s25, 3
      %p127 = por %p125, %p126
      %p128 = scmp.ne.s32.totalorder %s119, %s120
      %p129 = scmp.eq.s32.totalorder %s25, 0
      %p130 = por %p128, %p129
      %p131 = scmp.ne.s32.totalorder %s119, %s120
      %p132 = scmp.eq.s32.totalorder %s26, 3
      %p133 = por %p131, %p132
      %p135 = scmp.ne.s32.totalorder %s120, %s134
      %p136 = scmp.eq.s32.totalorder %s26, 0
      %p137 = por %p135, %p136
      %s139 = sadd.s32 %s138, 1
      %p142 = scmp.eq.s32.totalorder %s20, 3
      %p143 = scmp.ne.s32.totalorder %s138, %s140
      %p144 = scmp.eq.s32.totalorder %s20, 0
      %p145 = por %p143, %p144
      %p146 = scmp.ne.s32.totalorder %s138, %s140
      %p147 = scmp.eq.s32.totalorder %s25, 3
      %p148 = por %p146, %p147
      %p149 = scmp.ne.s32.totalorder %s140, %s141
      %p150 = scmp.eq.s32.totalorder %s25, 0
      %p151 = por %p149, %p150
      %p152 = scmp.ne.s32.totalorder %s140, %s141
      %p153 = scmp.eq.s32.totalorder %s26, 3
      %p154 = por %p152, %p153
      %p156 = scmp.ne.s32.totalorder %s141, %s155
      %p157 = scmp.eq.s32.totalorder %s26, 0
      %p158 = por %p156, %p157
      %s160 = sadd.s32 %s159, 1
      %p163 = scmp.eq.s32.totalorder %s20, 3
      %p164 = scmp.ne.s32.totalorder %s159, %s161
      %p165 = scmp.eq.s32.totalorder %s20, 0
      %p166 = por %p164, %p165
      %p167 = scmp.ne.s32.totalorder %s159, %s161
      %p168 = scmp.eq.s32.totalorder %s25, 3
      %p169 = por %p167, %p168
      %p170 = scmp.ne.s32.totalorder %s161, %s162
      %p171 = scmp.eq.s32.totalorder %s25, 0
      %p172 = por %p170, %p171
      %p173 = scmp.ne.s32.totalorder %s161, %s162
      %p174 = scmp.eq.s32.totalorder %s26, 3
      %p175 = por %p173, %p174
      %p177 = scmp.ne.s32.totalorder %s162, %s176
      %p178 = scmp.eq.s32.totalorder %s26, 0
      %p179 = por %p177, %p178
      %s180 = ssub.s32 %s27, %s39
      %s181 = ssub.s32 %s28, %s35
      %s182 = sor.u32 %s180, %s181
      %p183 = scmp.eq.s32.totalorder %s182, 0
      %s185 = sadd.s32 %s184, 1
      %s186 = scalar_select %p183, %s184, %s185
      %p189 = pneg %p183
      %p190 = scmp.eq.s32.totalorder %s20, 3
      %p191 = por %p189, %p190
      %p192 = scmp.ne.s32.totalorder %s184, %s187
      %p193 = scmp.eq.s32.totalorder %s20, 0
      %p194 = por %p192, %p193
      %p195 = scmp.ne.s32.totalorder %s184, %s187
      %p196 = scmp.eq.s32.totalorder %s25, 3
      %p197 = por %p195, %p196
      %p198 = scmp.ne.s32.totalorder %s187, %s188
      %p199 = scmp.eq.s32.totalorder %s25, 0
      %p200 = por %p198, %p199
      %p201 = scmp.ne.s32.totalorder %s187, %s188
      %p202 = scmp.eq.s32.totalorder %s26, 3
      %p203 = por %p201, %p202
      %p205 = scmp.ne.s32.totalorder %s188, %s204
      %p206 = scmp.eq.s32.totalorder %s26, 0
      %p207 = por %p205, %p206
      %s208 = ssub.s32 %s27, %s39
      %s209 = ssub.s32 %s28, %s35
      %s210 = sor.u32 %s208, %s209
      %p211 = scmp.eq.s32.totalorder %s210, 0
      %s213 = sadd.s32 %s212, 1
      %s214 = scalar_select %p211, %s212, %s213
      %p217 = pneg %p211
      %p218 = scmp.eq.s32.totalorder %s20, 3
      %p219 = por %p217, %p218
      %p220 = scmp.ne.s32.totalorder %s212, %s215
      %p221 = scmp.eq.s32.totalorder %s20, 0
      %p222 = por %p220, %p221
      %p223 = scmp.ne.s32.totalorder %s212, %s215
      %p224 = scmp.eq.s32.totalorder %s25, 3
      %p225 = por %p223, %p224
      %p226 = scmp.ne.s32.totalorder %s215, %s216
      %p227 = scmp.eq.s32.totalorder %s25, 0
      %p228 = por %p226, %p227
      %p229 = scmp.ne.s32.totalorder %s215, %s216
      %p230 = scmp.eq.s32.totalorder %s26, 3
      %p231 = por %p229, %p230
      %p233 = scmp.ne.s32.totalorder %s216, %s232
      %p234 = scmp.eq.s32.totalorder %s26, 0
      %p235 = por %p233, %p234
      %p236 = scmp.le.s32.totalorder 1, %s20
      %p237 = scmp.lt.s32.totalorder %s20, 5
      %p238 = pnand %p236, %p237
      %p239 = pneg %p238
      // Predicated region
      $region9: #{tpu_custom_call.1} parent=5 // pred_check
        _
      $region10: #{tpu_custom_call.1} parent=5 // pred_check_branch
        %241 = sbr.rel (%p238) target = $region12
      $region11: #{tpu_custom_call.1} parent=5 // pred_region
        %s242 = ssub.s32 %s20, 1
        // Predicated region
        $region13: #{tpu_custom_call.1} parent=11 // pred_check
          %p243 = pneg %p109
        $region14: #{tpu_custom_call.1} parent=11 // pred_check_branch
          %245 = sbr.rel (%p243) target = $region16
        $region15: #{tpu_custom_call.1} parent=11 // pred_region
          _
        $region16: #{tpu_custom_call.1} parent=11 // pred_fallthru
          _
        // Predicated region
        $region17: #{tpu_custom_call.1} parent=11 // pred_check
          %p246 = pneg %p130
        $region18: #{tpu_custom_call.1} parent=11 // pred_check_branch
          %248 = sbr.rel (%p246) target = $region20
        $region19: #{tpu_custom_call.1} parent=11 // pred_region
          _
        $region20: #{tpu_custom_call.1} parent=11 // pred_fallthru
          _
        // Predicated region
        $region21: #{tpu_custom_call.1} parent=11 // pred_check
          %p249 = pneg %p151
        $region22: #{tpu_custom_call.1} parent=11 // pred_check_branch
          %251 = sbr.rel (%p249) target = $region24
        $region23: #{tpu_custom_call.1} parent=11 // pred_region
          _
        $region24: #{tpu_custom_call.1} parent=11 // pred_fallthru
          _
        // Predicated region
        $region25: #{tpu_custom_call.1} parent=11 // pred_check
          %p252 = pneg %p172
        $region26: #{tpu_custom_call.1} parent=11 // pred_check_branch
          %254 = sbr.rel (%p252) target = $region28
        $region27: #{tpu_custom_call.1} parent=11 // pred_region
          _
        $region28: #{tpu_custom_call.1} parent=11 // pred_fallthru
          _
      $region12: #{tpu_custom_call.1} parent=5 // pred_fallthru
        _
      %p255 = scmp.lt.s32.totalorder %s20, 4
      // Predicated region
      $region29: #{tpu_custom_call.1} parent=5 // pred_check
        %p256 = pneg %p255
      $region30: #{tpu_custom_call.1} parent=5 // pred_check_branch
        %258 = sbr.rel (%p256) target = $region32
      $region31: #{tpu_custom_call.1} parent=5 // pred_region
        // Predicated region
        $region33: #{tpu_custom_call.1} parent=31 // pred_check
          %p259 = pneg %p54
        $region34: #{tpu_custom_call.1} parent=31 // pred_check_branch
          %261 = sbr.rel (%p259) target = $region36
        $region35: #{tpu_custom_call.1} parent=31 // pred_region
          %p262 = scmp.lt.s32.totalorder %s27, 1
          %s263 = scalar_select %p262, %s27, 1
          %p264 = scmp.lt.s32.totalorder %s28, 1
          %s265 = scalar_select %p264, %s28, 1
          %s266 = smul.addr %s263, 2
          %s267 = sadd.s32 %s265, %s266
          %s268 = smul.addr %s267, 8
          %s269 = scalar_lea.vmem %s0, %s268
        $region36: #{tpu_custom_call.1} parent=31 // pred_fallthru
          _
        // Predicated region
        $region37: #{tpu_custom_call.1} parent=31 // pred_check
          %p270 = pneg %p82
        $region38: #{tpu_custom_call.1} parent=31 // pred_check_branch
          %272 = sbr.rel (%p270) target = $region40
        $region39: #{tpu_custom_call.1} parent=31 // pred_region
          %p273 = scmp.lt.s32.totalorder %s27, 1
          %s274 = scalar_select %p273, %s27, 1
          %p275 = scmp.lt.s32.totalorder %s28, 1
          %s276 = scalar_select %p275, %s28, 1
          %s277 = smul.addr %s274, 2
          %s278 = sadd.s32 %s276, %s277
          %s279 = smul.addr %s278, 8
          %s280 = scalar_lea.vmem %s1, %s279
        $region40: #{tpu_custom_call.1} parent=31 // pred_fallthru
          _
      $region32: #{tpu_custom_call.1} parent=5 // pred_fallthru
        _
      %p281 = scmp.le.s32.totalorder 1, %s20
      %p282 = scmp.lt.s32.totalorder %s20, 5
      %p283 = pnand %p281, %p282
      %p284 = pneg %p283
      // Predicated region
      $region41: #{tpu_custom_call.1} parent=5 // pred_check
        _
      $region42: #{tpu_custom_call.1} parent=5 // pred_check_branch
        %286 = sbr.rel (%p283) target = $region44
      $region43: #{tpu_custom_call.1} parent=5 // pred_region
        %s287 = ssub.s32 %s20, 1
        %p288 = scmp.lt.s32.totalorder %s29, 1
        %s289 = scalar_select %p288, %s29, 1
        %p290 = scmp.lt.s32.totalorder %s30, 1
        %s291 = scalar_select %p290, %s30, 1
        %s292 = smul.addr %s289, 2
        %s293 = sadd.s32 %s291, %s292
        %s294 = smul.addr %s293, 8
        %s295 = scalar_lea.vmem %s0, %s294
        %p296 = pneg %p60
        %p297 = pneg %p57
        %p298 = scmp.lt.s32.totalorder %s29, 1
        %s299 = scalar_select %p298, %s29, 1
        %p300 = scmp.lt.s32.totalorder %s30, 1
        %s301 = scalar_select %p300, %s30, 1
        %s302 = smul.addr %s299, 2
        %s303 = sadd.s32 %s301, %s302
        %s304 = smul.addr %s303, 8
        %s305 = scalar_lea.vmem %s1, %s304
        %p306 = pneg %p88
        %p307 = pneg %p85
        %p308 = pneg %p109
        %p309 = pneg %p106
        %p310 = pneg %p130
        %p311 = pneg %p127
        %p312 = pneg %p151
        %p313 = pneg %p148
        %p314 = pneg %p172
        %p315 = pneg %p169
        %p316 = pneg %p200
        %p317 = pneg %p197
        %s318 = sand.u32 %s187, 1
        %s319 = scalar_lea.sflag [#allocation4], %s318
        %s320 = sand.u32 %s187, 1
        %s321 = smul.addr %s320, 8
        %s322 = scalar_lea.vmem [#allocation3], %s321
        %p323 = pneg %p228
        %p324 = pneg %p225
        %s325 = sand.u32 %s215, 1
        %s326 = scalar_lea.sflag [#allocation6], %s325
        %s327 = sand.u32 %s215, 1
        %s328 = smul.addr %s327, 8
        %s329 = scalar_lea.vmem [#allocation5], %s328
        %p330 = scmp.lt.s32.totalorder %s29, 1
        %s331 = scalar_select %p330, %s29, 1
        %p332 = scmp.lt.s32.totalorder %s30, 1
        %s333 = scalar_select %p332, %s30, 1
        %s334 = smul.addr %s331, 2
        %s335 = sadd.s32 %s333, %s334
        %s336 = smul.addr %s335, 8
        %s337 = scalar_lea.vmem %s0, %s336
        %p338 = scmp.lt.s32.totalorder %s29, 1
        %s339 = scalar_select %p338, %s29, 1
        %p340 = scmp.lt.s32.totalorder %s30, 1
        %s341 = scalar_select %p340, %s30, 1
        %s342 = smul.addr %s339, 2
        %s343 = sadd.s32 %s341, %s342
        %s344 = smul.addr %s343, 8
        %s345 = scalar_lea.vmem %s1, %s344
        %v346 = vld [vmem:[%s337] sm:$0xff]
        %p347 = scmp.eq.s32.totalorder %s30, 0
        // Predicated region
        $region45: #{tpu_custom_call.1} parent=43 // pred_check
          %p348 = pneg %p347
        $region46: #{tpu_custom_call.1} parent=43 // pred_check_branch
          %350 = sbr.rel (%p348) target = $region48
        $region47: #{tpu_custom_call.1} parent=43 // pred_region
          %vm351 = vcmask 15360
          %352 = vst.msk [vmem:[#allocation2] sm:$0xff] %vm351, 0.0
        $region48: #{tpu_custom_call.1} parent=43 // pred_fallthru
          _
        %v353 = vld [vmem:[#allocation2] sm:$0xff]
        %355 = vrot.lane.b32.xlu0 %v346, 2
        %v356 = vpop.permute.xlu0 %355
        %vm358 = vcmask 15360
        %v359 = vsel %vm358, %v353, %v356
        %v360 = vld [vmem:[%s2] sm:$0xff]
        %v361 = vld [vmem:[%s2 + $0x8] sm:$0xff]
        %s362 = scalar_lea.vmem %s2, 16
        %v363 = vld [vmem:[%s362] sm:$0xff]
        %v364 = vld [vmem:[%s362 + $0x8] sm:$0xff]
        %366 = vrot.lane.b32.xlu0 %v359, 126
        %v367 = vpop.permute.xlu0 %366
        %368 = vrot.lane.b32.xlu0 %v356, 126
        %v369 = vpop.permute.xlu0 %368
        %vm370 = vcmask 1031168
        %v371 = vsel %vm370, %v367, %v369
        %vm373 = vcmask 64512
        %v375 = vsel %vm373, %v363, 0
        %v378 = vsel %vm373, %v364, 0
        %380 = vmatpush.msra.mxu0 0.0
        %381 = vmatpush.msra.mxu0 0.0
        %382 = vmatpush.msra.mxu0 0.0
        %383 = vmatpush.msra.mxu0 0.0
        %384 = vmatpush.msra.mxu0 0.0
        %385 = vmatpush.msra.mxu0 0.0
        %386 = vmatpush.msra.mxu0 0.0
        %387 = vmatpush.msra.mxu0 0.0
        %388 = vmatpush.msra.mxu0 0.0
        %389 = vmatpush.msra.mxu0 0.0
        %390 = vmatpush.msra.mxu0 0.0
        %391 = vmatpush.msra.mxu0 0.0
        %392 = vmatpush.msra.mxu0 0.0
        %393 = vmatpush.msra.mxu0 0.0
        %394 = vmatpush.msra.mxu0 0.0
        %395 = vmatpush.msra.mxu0 %v371
        %396 = vmatmul.f32.gmra.mxu0 %v375
        %v397 = vpop.f32.mrf.mxu0
        %v398 = vadd.f32 0.0, %v397
        %399 = vmatmul.f32.gmra.mxu0 %v378
        %v400 = vpop.f32.mrf.mxu0
        %v401 = vadd.f32 0.0, %v400
        %402 = vdwg.mxu0
        %v404 = vsel %vm373, %v360, 0
        %v407 = vsel %vm373, %v361, 0
        %409 = vmatpush.msra.mxu0 0.0
        %410 = vmatpush.msra.mxu0 0.0
        %411 = vmatpush.msra.mxu0 0.0
        %412 = vmatpush.msra.mxu0 0.0
        %413 = vmatpush.msra.mxu0 0.0
        %414 = vmatpush.msra.mxu0 0.0
        %415 = vmatpush.msra.mxu0 0.0
        %416 = vmatpush.msra.mxu0 0.0
        %417 = vmatpush.msra.mxu0 0.0
        %418 = vmatpush.msra.mxu0 0.0
        %419 = vmatpush.msra.mxu0 0.0
        %420 = vmatpush.msra.mxu0 0.0
        %421 = vmatpush.msra.mxu0 0.0
        %422 = vmatpush.msra.mxu0 0.0
        %423 = vmatpush.msra.mxu0 0.0
        %424 = vmatpush.msra.mxu0 %v359
        %425 = vmatmul.f32.gmra.mxu0 %v404
        %v426 = vpop.f32.mrf.mxu0
        %v427 = vadd.f32 %v398, %v426
        %428 = vmatmul.f32.gmra.mxu0 %v407
        %v429 = vpop.f32.mrf.mxu0
        %v430 = vadd.f32 %v401, %v429
        %431 = vdwg.mxu0
        %v432 = vld [vmem:[%s3] sm:$0xff]
        %v433 = vld [vmem:[%s3 + $0x8] sm:$0xff]
        %435 = vset.pattern.permute.xlu0 0
        %436 = vperm.xlu0 %435, %v432
        %v437 = vpop.permute.xlu0 %436
        %440 = vset.pattern.permute.xlu0 0
        %441 = vperm.xlu0 %440, %v433
        %v442 = vpop.permute.xlu0 %441
        %v444 = vadd.f32 %v427, %v437
        %v445 = vadd.f32 %v430, %v442
        %v446 = vtanh.pop %v444
        %v447 = vxor.u32 %v445, 2147483648
        %v448 = vmul.f32 %v447, 1.442695
        %v449 = vpow.pop %v448
        %v450 = vadd.f32 %v449, 1.0
        %v451 = vrcp.pop %v450
        %v452 = vmul.f32 %v450, %v451
        %v453 = vsub.f32 1.0, %v452
        %v454 = vmul.f32 %v451, %v453
        %v455 = vadd.f32 %v451, %v454
        %vm456 = vweird.f32 %v450
        %vm457 = vweird.f32 %v451
        %vm458 = vmor %vm456, %vm457
        %v459 = vsel %vm458, %v451, %v455
        %v460 = vand.u32 2147483647, %v450
        %vm461 = vcmp.eq.f32.partialorder %v460, 8.507059e+37
        %v462 = vand.u32 %v450, 2147483648
        %v463 = vor.u32 1.1754944e-38, %v462
        %v464 = vsel %vm461, %v463, %v459
        %v465 = vmul.f32 1.0, %v464
        %v466 = vmul.f32 %v446, %v465
        %v467 = vld [vmem:[%s4] sm:$0xff]
        %v468 = vld [vmem:[%s4 + $0x8] sm:$0xff]
        %v469 = vld [vmem:[%s5] sm:$0xff]
        %v470 = vld [vmem:[%s5 + $0x8] sm:$0xff]
        %472 = vset.pattern.permute.xlu0 0
        %473 = vperm.xlu0 %472, %v469
        %v474 = vpop.permute.xlu0 %473
        %477 = vset.pattern.permute.xlu0 0
        %478 = vperm.xlu0 %477, %v470
        %v479 = vpop.permute.xlu0 %478
        %v482 = vsel %vm373, %v467, 0
        %v485 = vsel %vm373, %v468, 0
        %487 = vmatpush.msra.mxu0 0.0
        %488 = vmatpush.msra.mxu0 0.0
        %489 = vmatpush.msra.mxu0 0.0
        %490 = vmatpush.msra.mxu0 0.0
        %491 = vmatpush.msra.mxu0 0.0
        %492 = vmatpush.msra.mxu0 0.0
        %493 = vmatpush.msra.mxu0 0.0
        %494 = vmatpush.msra.mxu0 0.0
        %495 = vmatpush.msra.mxu0 0.0
        %496 = vmatpush.msra.mxu0 0.0
        %497 = vmatpush.msra.mxu0 0.0
        %498 = vmatpush.msra.mxu0 0.0
        %499 = vmatpush.msra.mxu0 0.0
        %500 = vmatpush.msra.mxu0 0.0
        %501 = vmatpush.msra.mxu0 0.0
        %502 = vmatpush.msra.mxu0 %v466
        %503 = vmatmul.f32.gmra.mxu0 %v482
        %v504 = vpop.f32.mrf.mxu0
        %v505 = vadd.f32 %v474, %v504
        %506 = vmatmul.f32.gmra.mxu0 %v485
        %v507 = vpop.f32.mrf.mxu0
        %v508 = vadd.f32 %v479, %v507
        %509 = vdwg.mxu0
        %v510 = vadd.f32 %v346, %v505
        %511 = vst [vmem:[%s322] sm:$0xff] %v510
        %v512 = vld [vmem:[%s345] sm:$0xff]
        %v513 = vadd.f32 %v512, %v508
        %514 = vst [vmem:[%s329] sm:$0xff] %v513
        %515 = vst.msk [vmem:[#allocation2] sm:$0xff] %vm358, %v356
        %s516 = sand.u32 %s187, 1
        %s517 = scalar_lea.sflag [#allocation4], %s516
        %s518 = sand.u32 %s187, 1
        %s519 = smul.addr %s518, 8
        %s520 = scalar_lea.vmem [#allocation3], %s519
        %s521 = sand.u32 %s215, 1
        %s522 = scalar_lea.sflag [#allocation6], %s521
        %s523 = sand.u32 %s215, 1
        %s524 = smul.addr %s523, 8
        %s525 = scalar_lea.vmem [#allocation5], %s524
        // Predicated region
        $region49: #{tpu_custom_call.1} parent=43 // pred_check
          %p526 = pneg %p197
        $region50: #{tpu_custom_call.1} parent=43 // pred_check_branch
          %528 = sbr.rel (%p526) target = $region52
        $region51: #{tpu_custom_call.1} parent=43 // pred_region
          %530 = vsyncadd %s517, 0
          %s531 = smul.addr %s29, 2
          %s532 = sadd.s32 %s30, %s531
          %s533 = smul.addr %s532, 8
          %s534 = scalar_lea.hbm %s6, %s533
          %s536 = sshll.u32 %s520, 4
          %s537 = int_to_ptr.vmem [resolvable:$true] %s536
          %s538 = sshll.u32 %s534, 4
          %s539 = int_to_ptr.hbm [resolvable:$true] %s538
          %541 = dma.vmem_to_hbm [thread:$0]  %s537, 128, %s539, %s517
        $region52: #{tpu_custom_call.1} parent=43 // pred_fallthru
          _
        // Predicated region
        $region53: #{tpu_custom_call.1} parent=43 // pred_check
          %p542 = pneg %p225
        $region54: #{tpu_custom_call.1} parent=43 // pred_check_branch
          %544 = sbr.rel (%p542) target = $region56
        $region55: #{tpu_custom_call.1} parent=43 // pred_region
          %546 = vsyncadd %s522, 0
          %s547 = smul.addr %s29, 2
          %s548 = sadd.s32 %s30, %s547
          %s549 = smul.addr %s548, 8
          %s550 = scalar_lea.hbm %s7, %s549
          %s552 = sshll.u32 %s525, 4
          %s553 = int_to_ptr.vmem [resolvable:$true] %s552
          %s554 = sshll.u32 %s550, 4
          %s555 = int_to_ptr.hbm [resolvable:$true] %s554
          %557 = dma.vmem_to_hbm [thread:$0]  %s553, 128, %s555, %s522
        $region56: #{tpu_custom_call.1} parent=43 // pred_fallthru
          _
      $region44: #{tpu_custom_call.1} parent=5 // pred_fallthru
        _
      %p558 = scmp.le.s32.totalorder 2, %s20
      // Predicated region
      $region57: #{tpu_custom_call.1} parent=5 // pred_check
        %p559 = pneg %p558
      $region58: #{tpu_custom_call.1} parent=5 // pred_check_branch
        %561 = sbr.rel (%p559) target = $region60
      $region59: #{tpu_custom_call.1} parent=5 // pred_region
        %s562 = ssub.s32 %s20, 2
        // Predicated region
        $region61: #{tpu_custom_call.1} parent=59 // pred_check
          %p563 = pneg %p203
        $region62: #{tpu_custom_call.1} parent=59 // pred_check_branch
          %565 = sbr.rel (%p563) target = $region64
        $region63: #{tpu_custom_call.1} parent=59 // pred_region
          %s566 = sand.u32 %s188, 1
          %s567 = scalar_lea.sflag [#allocation4], %s566
          %s568 = sand.u32 %s188, 1
          %s569 = smul.addr %s568, 8
          %s570 = scalar_lea.vmem [#allocation3], %s569
          %572 = dma.done %s567, 128
        $region64: #{tpu_custom_call.1} parent=59 // pred_fallthru
          _
        // Predicated region
        $region65: #{tpu_custom_call.1} parent=59 // pred_check
          %p573 = pneg %p231
        $region66: #{tpu_custom_call.1} parent=59 // pred_check_branch
          %575 = sbr.rel (%p573) target = $region68
        $region67: #{tpu_custom_call.1} parent=59 // pred_region
          %s576 = sand.u32 %s216, 1
          %s577 = scalar_lea.sflag [#allocation6], %s576
          %s578 = sand.u32 %s216, 1
          %s579 = smul.addr %s578, 8
          %s580 = scalar_lea.vmem [#allocation5], %s579
          %582 = dma.done %s577, 128
        $region68: #{tpu_custom_call.1} parent=59 // pred_fallthru
          _
      $region60: #{tpu_custom_call.1} parent=5 // pred_fallthru
        _
    $region6: #{tpu_custom_call.1} parent=1 // loop_footer
      %s24 = sadd.s32 1, %s20
    $region7: #{tpu_custom_call.1} parent=1 // loop_footer_branch
      %19 = sbr.rel target = $region3
    $region8: #{tpu_custom_call.1} parent=1 // loop_exit
      _
    %583 = vsyncpa [#allocation4], 1
    %s584 = scalar_lea.sflag [#allocation4], 1
    %585 = vsyncpa %s584, 1
    %586 = vsyncpa [#allocation6], 1
    %s587 = scalar_lea.sflag [#allocation6], 1
    %588 = vsyncpa %s587, 1

</llo_original>
